<compile_context>
chip_gen: v7x
topology: tpu7x:2x2x1
jax: 0.10.0
libtpu: 0.0.40
codegen_flags: <defaults>
</compile_context>

<pallas_src>
import functools

import jax
import jax.numpy as jnp
import numpy as np
from jax.experimental import pallas as pl
from jax.experimental.pallas import tpu as pltpu

_LN2 = 0.6931471805599453


def _round_up(x, m):
    return ((x + m - 1) // m) * m


# --------------------------------------------------------------------------
# Pass 1: per-item rank / gain / discount.  Grid (i_tiles, j_tiles); the rank
# row block (1, tile) is resident across j; VMEM is independent of N.
# --------------------------------------------------------------------------
def _stats_kernel(t_i_ref, t_j_ref, rank_ref, gain_ref, disc_ref, *, k):
    tj = pl.program_id(1)

    @pl.when(tj == 0)
    def _init():
        rank_ref[...] = jnp.zeros_like(rank_ref)

    t_i = t_i_ref[...]                                   # (1, tile)  targets, -inf padded
    t_j = t_j_ref[...]                                   # (tile, 1)  targets, -inf padded
    greater = (t_j > t_i).astype(jnp.float32)            # (tile_j, tile_i)
    rank_ref[...] += jnp.sum(greater, axis=0, keepdims=True)   # (1, tile_i)

    @pl.when(tj == pl.num_programs(1) - 1)
    def _finalize():
        rank = rank_ref[...]
        # Padded lanes (t = -inf): gain = -1, rank = n >= k_eff -> disc = 0, so they
        # contribute nothing to ideal_dcg and are masked in pass 2 by the sentinels.
        gain_ref[...] = jnp.exp(t_i * _LN2) - 1.0                      # 2^t - 1
        disc_ref[...] = jnp.where(rank < k, _LN2 / jnp.log(rank + 2.0), 0.0)


# --------------------------------------------------------------------------
# Pass 2: masked pairwise lambda terms.  Grid (i_tiles "parallel", j_tiles
# "arbitrary"); j features resident; per-tile top-k flags in SMEM; deferred
# reduction into a (tile, 1) VMEM scratch accumulator.
# --------------------------------------------------------------------------
def _pairwise_kernel(flags_ref, ifeat_ref, jfeat_ref, out_ref, acc_ref, *, sigma, tile):
    ti = pl.program_id(0)
    tj = pl.program_id(1)

    @pl.when(tj == 0)
    def _init():
        acc_ref[...] = jnp.zeros_like(acc_ref)

    # delta_ij == 0 whenever neither tile holds a top-k item -> skip all compute.
    @pl.when(flags_ref[ti] + flags_ref[tj] > 0)
    def _compute():
        feat = ifeat_ref[...]                            # (tile, 4): [pred, targ, gain, disc]
        p_i, t_i = feat[:, 0:1], feat[:, 1:2]            # (tile, 1) columns (i on sublanes)
        g_i, d_i = feat[:, 2:3], feat[:, 3:4]

        js = pl.ds(pl.multiple_of(tj * tile, 128), tile) # slice the resident j slab
        p_j = jfeat_ref[0:1, js]                         # (1, tile) rows (j on lanes)
        t_j = jfeat_ref[1:2, js]                         # (+inf padded)
        g_j = jfeat_ref[2:3, js]
        d_j = jfeat_ref[3:4, js]

        # Sentinel padding (i-targets -inf, j-targets +inf) makes this compare false
        # for every padded row/column, so no iota / boundary masks are needed.
        mask = t_i > t_j                                 # (tile, tile)
        delta = jnp.abs((g_i - g_j) * (d_i - d_j))       # |Delta DCG| (un-normalized)
        x = sigma * (p_i - p_j)
        # -log(sigmoid(x)) == softplus(-x), numerically stable form.
        neg_log_pij = jnp.maximum(-x, 0.0) + jnp.log1p(jnp.exp(-jnp.abs(x)))
        contrib = jnp.where(mask, neg_log_pij * delta, 0.0)
        # Deferred reduction: only a lane-reduce per step; scalar collapse at the end.
        acc_ref[...] += jnp.sum(contrib, axis=1, keepdims=True)

    @pl.when(tj == pl.num_programs(1) - 1)
    def _finalize():
        out_ref[...] = jnp.zeros_like(out_ref) + jnp.sum(acc_ref[...])


def lambdarank_loss(predictions, targets, *, sigma=1.0, k=10, tile=512):
    """Pallas TPU implementation of LambdaRankLoss.forward (1-D score vectors)."""
    n = int(predictions.shape[0])
    if n == 0:
        return jnp.float32(0.0)
    tile = max(128, _round_up(int(tile), 128))           # lane-aligned tiles
    n_pad = _round_up(n, tile)
    nt = n_pad // tile
    k_eff = int(min(k, n))

    preds = predictions.astype(jnp.float32)
    targs = targets.astype(jnp.float32)

    pred_pad = jnp.zeros((n_pad,), jnp.float32).at[:n].set(preds)
    targ_lo = jnp.full((n_pad,), -jnp.inf, jnp.float32).at[:n].set(targs)  # i-side sentinel
    targ_hi = jnp.full((n_pad,), jnp.inf, jnp.float32).at[:n].set(targs)   # j-side sentinel

    # ---- Pass 1: per-item stats (2-D tiled, VMEM independent of N) ---------------
    rank_row, gain_row, disc_row = pl.pallas_call(
        functools.partial(_stats_kernel, k=k_eff),
        out_shape=(
            jax.ShapeDtypeStruct((1, n_pad), jnp.float32),   # rank
            jax.ShapeDtypeStruct((1, n_pad), jnp.float32),   # gain
            jax.ShapeDtypeStruct((1, n_pad), jnp.float32),   # discount
        ),
        grid_spec=pltpu.PrefetchScalarGridSpec(
            num_scalar_prefetch=0,
            grid=(nt, nt),
            in_specs=[
                pl.BlockSpec((1, tile), lambda i, j: (0, i)),    # targets, row form (i)
                pl.BlockSpec((tile, 1), lambda i, j: (j, 0)),    # targets, column form (j)
            ],
            out_specs=(
                pl.BlockSpec((1, tile), lambda i, j: (0, i)),
                pl.BlockSpec((1, tile), lambda i, j: (0, i)),
                pl.BlockSpec((1, tile), lambda i, j: (0, i)),
            ),
        ),
        compiler_params=pltpu.CompilerParams(
            dimension_semantics=("parallel", "arbitrary")),
    )(targ_lo.reshape(1, n_pad), targ_lo.reshape(n_pad, 1))

    rank = rank_row[0]
    gain = gain_row[0]
    disc = disc_row[0]
    ideal_abs = jnp.abs(jnp.sum(gain * disc))            # padded lanes: (-1) * 0 = 0
    n_pairs = jnp.sum(rank[:n])                          # = #{(i, j): t_i > t_j}

    # ---- Top-k packing: move items with disc > 0 to the front (tile 0). A single
    # consistent permutation of items leaves the pairwise double-sum unchanged but
    # lets the per-tile flag skip drop computed blocks from nt^2 to ~2*nt-1. -------
    lane = jnp.arange(n_pad)
    key = jnp.where(disc > 0.0, 0, jnp.where(lane < n, 1, 2)).astype(jnp.int32)
    perm = jnp.argsort(key)
    pred_p = pred_pad[perm]
    t_i_p = targ_lo[perm]
    t_j_p = targ_hi[perm]
    gain_p = gain[perm]
    disc_p = disc[perm]

    # i-side features column-form (one small DMA per i-tile); j-side features packed
    # into a single (8, n_pad) row-form slab that stays resident in VMEM.
    ifeat = jnp.stack([pred_p, t_i_p, gain_p, disc_p], axis=1)              # (n_pad, 4)
    jfeat = jnp.concatenate(
        [jnp.stack([pred_p, t_j_p, gain_p, disc_p], axis=0),
         jnp.zeros((4, n_pad), jnp.float32)], axis=0)                       # (8, n_pad)
    flags = (jnp.max(disc_p.reshape(nt, tile), axis=1) > 0.0).astype(jnp.int32)

    # ---- Pass 2: pairwise loss, per-i-tile partial sums ---------------------------
    partials = pl.pallas_call(
        functools.partial(_pairwise_kernel, sigma=float(sigma), tile=tile),
        out_shape=jax.ShapeDtypeStruct((nt * 8, 128), jnp.float32),
        grid_spec=pltpu.PrefetchScalarGridSpec(
            num_scalar_prefetch=1,                       # flags -> SMEM
            grid=(nt, nt),
            in_specs=[
                pl.BlockSpec((tile, 4), lambda i, j, flg: (i, 0)),    # i features
                pl.BlockSpec((8, n_pad), lambda i, j, flg: (0, 0)),   # j features (resident)
            ],
            out_specs=pl.BlockSpec((8, 128), lambda i, j, flg: (i, 0)),
            scratch_shapes=[pltpu.VMEM((tile, 1), jnp.float32)],
        ),
        compiler_params=pltpu.CompilerParams(
            dimension_semantics=("parallel", "arbitrary")),
    )(flags, ifeat, jfeat)

    total = jnp.sum(partials[0::8, 0])                   # one partial sum per i-tile
    # PyTorch returns 0 when there are no pairs; additionally guard ideal_dcg == 0
    # (the reference would produce inf/nan in that degenerate case).
    loss = jnp.where((n_pairs > 0.0) & (ideal_abs > 0.0),
                     total / (n_pairs * ideal_abs), 0.0)
    return loss


def _numpy_reference(predictions, targets, sigma=1.0, k=10):
    """Literal transcription of the PyTorch loop (for verification)."""
    preds = np.asarray(predictions, dtype=np.float64)
    targs = np.asarray(targets, dtype=np.float64)
    n = preds.shape[0]

    def dcg(t, indices):
        kk = min(k, n)
        topk = indices[:kk]
        gains = 2.0 ** t[topk] - 1.0
        discounts = np.log2(np.arange(1, kk + 1, dtype=np.float64) + 1.0)
        return float(np.sum(gains / discounts))

    pairs = [(i, j) for i in range(n) for j in range(n) if targs[i] > targs[j]]
    if not pairs:
        return 0.0
    sorted_idx = np.argsort(-targs, kind="stable")
    ideal = dcg(targs, sorted_idx)
    rank = np.zeros(n, dtype=np.int64)
    rank[sorted_idx] = np.arange(n)
    total = 0.0
    for (i, j) in pairs:
        sw = rank.copy()
        sw[i], sw[j] = rank[j], rank[i]
        sw_sorted = np.zeros(n, dtype=np.int64)
        sw_sorted[sw] = np.arange(n)
        delta = abs((dcg(targs, sw_sorted) - ideal) / ideal)
        pij = 1.0 / (1.0 + np.exp(-sigma * (preds[i] - preds[j])))
        total += -np.log(pij + 1e-10) * delta
    return total / len(pairs)


if __name__ == "__main__":
    key = jax.random.PRNGKey(0)
    kp1, kt1, kp2, kt2 = jax.random.split(key, 4)

    # Test 1: tiny [batch_size] score vector, like the module's inputs (single tile).
    n1 = 8
    preds1 = jax.random.normal(kp1, (n1,), dtype=jnp.float32)
    targs1 = jax.random.permutation(kt1, jnp.arange(n1, dtype=jnp.float32))
    loss1 = jax.block_until_ready(lambdarank_loss(preds1, targs1,
                                                  sigma=1.0, k=10, tile=128))
    ref1 = _numpy_reference(np.array(preds1), np.array(targs1), sigma=1.0, k=10)
    assert np.isfinite(float(loss1)), "non-finite loss (test 1)"
    assert abs(float(loss1) - ref1) < 1e-4 * max(1.0, abs(ref1)), (float(loss1), ref1)

    # Test 2: exercises the 2x2 grid, padding (133 -> 256), the top-k packing
    # permutation (top-k targets scattered, then packed into tile 0) and the
    # flag-based block skip (only blocks touching tile 0 run).
    n2 = 133
    preds2 = jax.random.normal(kp2, (n2,), dtype=jnp.float32)
    targs2 = jax.random.permutation(
        kt2, jnp.linspace(4.0, 0.0, n2, dtype=jnp.float32))  # distinct targets
    loss2 = jax.block_until_ready(lambdarank_loss(preds2, targs2,
                                                  sigma=1.0, k=6, tile=128))
    ref2 = _numpy_reference(np.array(preds2), np.array(targs2), sigma=1.0, k=6)
    assert np.isfinite(float(loss2)), "non-finite loss (test 2)"
    assert abs(float(loss2) - ref2) < 1e-4 * max(1.0, abs(ref2)), (float(loss2), ref2)

    print("KERNEL_OK")
</pallas_src>

<mosaic_0001>
module attributes {stable_mosaic.version = 11 : i64} {
  func.func @_stats_kernel(%arg0: i32, %arg1: i32, %arg2: memref<1x128xf32, #tpu.memory_space<vmem>>, %arg3: memref<128x1xf32, #tpu.memory_space<vmem>>, %arg4: memref<1x128xf32, #tpu.memory_space<vmem>>, %arg5: memref<1x128xf32, #tpu.memory_space<vmem>>, %arg6: memref<1x128xf32, #tpu.memory_space<vmem>>) attributes {dimension_semantics = [#tpu.dimension_semantics<parallel>, #tpu.dimension_semantics<arbitrary>], iteration_bounds = array<i64: 1, 1>, scalar_prefetch = 0 : i64, scratch_operands = 0 : i64, tpu.core_type = #tpu.core_type<tc>, window_params = [{transform_indices = @transform_0, window_bounds = array<i64: 1, 128>}, {transform_indices = @transform_1, window_bounds = array<i64: 128, 1>}, {transform_indices = @transform_2, window_bounds = array<i64: 1, 128>}, {transform_indices = @transform_3, window_bounds = array<i64: 1, 128>}, {transform_indices = @transform_4, window_bounds = array<i64: 1, 128>}]} {
    %c0_i32 = arith.constant 0 : i32
    %0 = arith.cmpi eq, %arg1, %c0_i32 : i32
    %1 = arith.extui %0 : i1 to i32
    %c0_i32_0 = arith.constant 0 : i32
    %2 = arith.cmpi ne, %1, %c0_i32_0 : i32
    scf.if %2 {
      %cst_10 = arith.constant 0.000000e+00 : f32
      %18 = vector.broadcast %cst_10 : f32 to vector<1x128xf32>
      %c0_11 = arith.constant 0 : index
      %c0_12 = arith.constant 0 : index
      %19 = vector.load %arg4[%c0_11, %c0_12] : memref<1x128xf32, #tpu.memory_space<vmem>>, vector<1x128xf32>
      tpu.vector_store %arg4[%c0_11, %c0_12], %18 {strides = array<i32>} : memref<1x128xf32, #tpu.memory_space<vmem>>, vector<1x128xf32>,
    } else {
    }
    %c0 = arith.constant 0 : index
    %c0_1 = arith.constant 0 : index
    %3 = vector.load %arg2[%c0, %c0_1] : memref<1x128xf32, #tpu.memory_space<vmem>>, vector<1x128xf32>
    %c0_2 = arith.constant 0 : index
    %c0_3 = arith.constant 0 : index
    %4 = vector.load %arg3[%c0_2, %c0_3] : memref<128x1xf32, #tpu.memory_space<vmem>>, vector<128x1xf32>
    %5 = vector.broadcast %4 : vector<128x1xf32> to vector<128x128xf32>
    %6 = vector.broadcast %3 : vector<1x128xf32> to vector<128x128xf32>
    %7 = arith.cmpf ogt, %5, %6 : vector<128x128xf32>
    %8 = arith.extui %7 : vector<128x128xi1> to vector<128x128xi32>
    %9 = arith.sitofp %8 : vector<128x128xi32> to vector<128x128xf32>
    %c0_4 = arith.constant 0 : index
    %c0_5 = arith.constant 0 : index
    %10 = vector.load %arg4[%c0_4, %c0_5] : memref<1x128xf32, #tpu.memory_space<vmem>>, vector<1x128xf32>
    %cst = arith.constant dense<0.000000e+00> : vector<128xf32>
    %11 = vector.multi_reduction <add>, %9, %cst [0] : vector<128x128xf32> to vector<128xf32>
    %12 = vector.shape_cast %11 : vector<128xf32> to vector<1x128xf32>
    %13 = arith.addf %10, %12 : vector<1x128xf32>
    %c0_6 = arith.constant 0 : index
    %c0_7 = arith.constant 0 : index
    %14 = vector.load %arg4[%c0_6, %c0_7] : memref<1x128xf32, #tpu.memory_space<vmem>>, vector<1x128xf32>
    tpu.vector_store %arg4[%c0_6, %c0_7], %13 {strides = array<i32>} : memref<1x128xf32, #tpu.memory_space<vmem>>, vector<1x128xf32>,
    %c0_i32_8 = arith.constant 0 : i32
    %15 = arith.cmpi eq, %arg1, %c0_i32_8 : i32
    %16 = arith.extui %15 : i1 to i32
    %c0_i32_9 = arith.constant 0 : i32
    %17 = arith.cmpi ne, %16, %c0_i32_9 : i32
    scf.if %17 {
      %c0_10 = arith.constant 0 : index
      %c0_11 = arith.constant 0 : index
      %18 = vector.load %arg4[%c0_10, %c0_11] : memref<1x128xf32, #tpu.memory_space<vmem>>, vector<1x128xf32>
      %cst_12 = arith.constant 0.693147182 : f32
      %19 = vector.broadcast %cst_12 : f32 to vector<1x128xf32>
      %20 = arith.mulf %3, %19 : vector<1x128xf32>
      %21 = math.exp %20 : vector<1x128xf32>
      %cst_13 = arith.constant 1.000000e+00 : f32
      %22 = vector.broadcast %cst_13 : f32 to vector<1x128xf32>
      %23 = arith.subf %21, %22 : vector<1x128xf32>
      %c0_14 = arith.constant 0 : index
      %c0_15 = arith.constant 0 : index
      %24 = vector.load %arg5[%c0_14, %c0_15] : memref<1x128xf32, #tpu.memory_space<vmem>>, vector<1x128xf32>
      tpu.vector_store %arg5[%c0_14, %c0_15], %23 {strides = array<i32>} : memref<1x128xf32, #tpu.memory_space<vmem>>, vector<1x128xf32>,
      %cst_16 = arith.constant 8.000000e+00 : f32
      %25 = vector.broadcast %cst_16 : f32 to vector<1x128xf32>
      %26 = arith.cmpf olt, %18, %25 : vector<1x128xf32>
      %cst_17 = arith.constant 2.000000e+00 : f32
      %27 = vector.broadcast %cst_17 : f32 to vector<1x128xf32>
      %28 = arith.addf %18, %27 : vector<1x128xf32>
      %29 = math.log %28 : vector<1x128xf32>
      %cst_18 = arith.constant 0.693147182 : f32
      %30 = vector.broadcast %cst_18 : f32 to vector<1x128xf32>
      %31 = arith.divf %30, %29 : vector<1x128xf32>
      %cst_19 = arith.constant 0.000000e+00 : f32
      %32 = vector.broadcast %cst_19 : f32 to vector<1x128xf32>
      %33 = arith.select %26, %31, %32 : vector<1x128xi1>, vector<1x128xf32>
      %c0_20 = arith.constant 0 : index
      %c0_21 = arith.constant 0 : index
      %34 = vector.load %arg6[%c0_20, %c0_21] : memref<1x128xf32, #tpu.memory_space<vmem>>, vector<1x128xf32>
      tpu.vector_store %arg6[%c0_20, %c0_21], %33 {strides = array<i32>} : memref<1x128xf32, #tpu.memory_space<vmem>>, vector<1x128xf32>,
    } else {
    }
    return
  }
  func.func @transform_0(%arg0: i32, %arg1: i32) -> (i32, i32) {
    %c0_i32 = arith.constant 0 : i32
    %c0_i32_0 = arith.constant 0 : i32
    return %c0_i32, %arg0 : i32, i32
  }
  func.func @transform_1(%arg0: i32, %arg1: i32) -> (i32, i32) {
    %c0_i32 = arith.constant 0 : i32
    %c0_i32_0 = arith.constant 0 : i32
    return %arg1, %c0_i32 : i32, i32
  }
  func.func @transform_2(%arg0: i32, %arg1: i32) -> (i32, i32) {
    %c0_i32 = arith.constant 0 : i32
    %c0_i32_0 = arith.constant 0 : i32
    return %c0_i32, %arg0 : i32, i32
  }
  func.func @transform_3(%arg0: i32, %arg1: i32) -> (i32, i32) {
    %c0_i32 = arith.constant 0 : i32
    %c0_i32_0 = arith.constant 0 : i32
    return %c0_i32, %arg0 : i32, i32
  }
  func.func @transform_4(%arg0: i32, %arg1: i32) -> (i32, i32) {
    %c0_i32 = arith.constant 0 : i32
    %c0_i32_0 = arith.constant 0 : i32
    return %c0_i32, %arg0 : i32, i32
  }
}

</mosaic_0001>

<llo_original>
// kernel: tpu_custom_call.1
$region0: #{tpu_custom_call.1}
  #allocation0 [shape = 'u32[]', space=smem, size = 0x4, offset = 0x4, fixed_abs, tag = 'smem constant byte address 0x4 - core index']
  #allocation1 [shape = 'u32[144,128]{1,0:T(1,128)}', space=vmem, size = 0x12000, scoped, tag = 'internal scratch']
  %s0 = inlined_call_operand.vmem [shape: f32[1,128], index: 0, kind: input, shape index: {}]
  %s1 = inlined_call_operand.vmem [shape: f32[128,1], index: 1, kind: input, shape index: {}]
  %s2 = inlined_call_operand.hbm [shape: f32[1,128], index: 2, kind: output, shape index: {0}]
  %s3 = inlined_call_operand.hbm [shape: f32[1,128], index: 3, kind: output, shape index: {1}]
  %s4 = inlined_call_operand.hbm [shape: f32[1,128], index: 4, kind: output, shape index: {2}]
  %5 = xla_tuple %s2, %s3, %s4
  %s6 = sld [smem:[#allocation0]]
  $region42: #{tpu_custom_call.1} parent=0
    _
  %s8 = ssub.s32 1, %s6
  %s9 = scalar_select 0, %s8, %s6
  $region1: #{tpu_custom_call.1} parent=0
    #allocation2 [shape = 'u8[512]{0}', space=vmem, size = 0x400, scoped, tag = 'output window, operand 0, single buffered']
    #allocation3 [shape = 's32[1]{0}', space=sflag, size = 0x4, scoped, tag = 'scoped memory for tpu_custom_call.1']
    #allocation4 [shape = 'u8[512]{0}', space=vmem, size = 0x400, scoped, tag = 'output window, operand 1, single buffered']
    #allocation5 [shape = 's32[1]{0}', space=sflag, size = 0x4, scoped, tag = 'scoped memory for tpu_custom_call.1']
    #allocation6 [shape = 'u8[512]{0}', space=vmem, size = 0x400, scoped, tag = 'output window, operand 2, single buffered']
    %10 = vsyncpa [#allocation3], 0
    %11 = vsyncpa [#allocation5], 0
    // Predicated region
    $region2: #{tpu_custom_call.1} parent=1 // pred_check
      _
    $region3: #{tpu_custom_call.1} parent=1 // pred_check_branch
      %13 = sbr.rel (0) target = $region5
    $region4: #{tpu_custom_call.1} parent=1 // pred_region
      _
    $region5: #{tpu_custom_call.1} parent=1 // pred_fallthru
      _
    // Predicated region
    $region6: #{tpu_custom_call.1} parent=1 // pred_check
      _
    $region7: #{tpu_custom_call.1} parent=1 // pred_check_branch
      %15 = sbr.rel (0) target = $region9
    $region8: #{tpu_custom_call.1} parent=1 // pred_region
      _
    $region9: #{tpu_custom_call.1} parent=1 // pred_fallthru
      _
    %p16 = scmp.eq.s32.totalorder 0, 0
    // Predicated region
    $region10: #{tpu_custom_call.1} parent=1 // pred_check
      %p17 = pneg %p16
    $region11: #{tpu_custom_call.1} parent=1 // pred_check_branch
      %19 = sbr.rel (%p17) target = $region13
    $region12: #{tpu_custom_call.1} parent=1 // pred_region
      %20 = vst [vmem:[#allocation2] sm:$0x1] 0.0
    $region13: #{tpu_custom_call.1} parent=1 // pred_fallthru
      _
    %v21 = vld [vmem:[%s0] sm:$0x1]
    %v22 = vld [vmem:[%s1] sm:$0xff]
    %v23 = vld [vmem:[%s1 + $0x8] sm:$0xff]
    %v24 = vld [vmem:[%s1 + $0x10] sm:$0xff]
    %v25 = vld [vmem:[%s1 + $0x18] sm:$0xff]
    %v26 = vld [vmem:[%s1 + $0x20] sm:$0xff]
    %v27 = vld [vmem:[%s1 + $0x28] sm:$0xff]
    %v28 = vld [vmem:[%s1 + $0x30] sm:$0xff]
    %v29 = vld [vmem:[%s1 + $0x38] sm:$0xff]
    %v30 = vld [vmem:[%s1 + $0x40] sm:$0xff]
    %v31 = vld [vmem:[%s1 + $0x48] sm:$0xff]
    %v32 = vld [vmem:[%s1 + $0x50] sm:$0xff]
    %v33 = vld [vmem:[%s1 + $0x58] sm:$0xff]
    %v34 = vld [vmem:[%s1 + $0x60] sm:$0xff]
    %v35 = vld [vmem:[%s1 + $0x68] sm:$0xff]
    %v36 = vld [vmem:[%s1 + $0x70] sm:$0xff]
    %v37 = vld [vmem:[%s1 + $0x78] sm:$0xff]
    %39 = vset.pattern.permute.xlu0 0
    %40 = vperm.xlu0 %39, %v22
    %v41 = vpop.permute.xlu0 %40
    %44 = vset.pattern.permute.xlu0 0
    %45 = vperm.xlu0 %44, %v23
    %v46 = vpop.permute.xlu0 %45
    %49 = vset.pattern.permute.xlu0 0
    %50 = vperm.xlu0 %49, %v24
    %v51 = vpop.permute.xlu0 %50
    %54 = vset.pattern.permute.xlu0 0
    %55 = vperm.xlu0 %54, %v25
    %v56 = vpop.permute.xlu0 %55
    %59 = vset.pattern.permute.xlu0 0
    %60 = vperm.xlu0 %59, %v26
    %v61 = vpop.permute.xlu0 %60
    %64 = vset.pattern.permute.xlu0 0
    %65 = vperm.xlu0 %64, %v27
    %v66 = vpop.permute.xlu0 %65
    %69 = vset.pattern.permute.xlu0 0
    %70 = vperm.xlu0 %69, %v28
    %v71 = vpop.permute.xlu0 %70
    %74 = vset.pattern.permute.xlu0 0
    %75 = vperm.xlu0 %74, %v29
    %v76 = vpop.permute.xlu0 %75
    %79 = vset.pattern.permute.xlu0 0
    %80 = vperm.xlu0 %79, %v30
    %v81 = vpop.permute.xlu0 %80
    %84 = vset.pattern.permute.xlu0 0
    %85 = vperm.xlu0 %84, %v31
    %v86 = vpop.permute.xlu0 %85
    %89 = vset.pattern.permute.xlu0 0
    %90 = vperm.xlu0 %89, %v32
    %v91 = vpop.permute.xlu0 %90
    %94 = vset.pattern.permute.xlu0 0
    %95 = vperm.xlu0 %94, %v33
    %v96 = vpop.permute.xlu0 %95
    %99 = vset.pattern.permute.xlu0 0
    %100 = vperm.xlu0 %99, %v34
    %v101 = vpop.permute.xlu0 %100
    %104 = vset.pattern.permute.xlu0 0
    %105 = vperm.xlu0 %104, %v35
    %v106 = vpop.permute.xlu0 %105
    %109 = vset.pattern.permute.xlu0 0
    %110 = vperm.xlu0 %109, %v36
    %v111 = vpop.permute.xlu0 %110
    %114 = vset.pattern.permute.xlu0 0
    %115 = vperm.xlu0 %114, %v37
    %v116 = vpop.permute.xlu0 %115
    %v119 = vlaneseq
    %v120 = vshrl.u32 %v119, 7
    %v121 = vsub.s32 0, %v120
    %v122 = vrot.slane %v21, %v121
    %vm124 = vcmp.gt.f32.partialorder %v41, %v122
    %vm125 = vcmp.gt.f32.partialorder %v46, %v122
    %vm126 = vcmp.gt.f32.partialorder %v51, %v122
    %vm127 = vcmp.gt.f32.partialorder %v56, %v122
    %vm128 = vcmp.gt.f32.partialorder %v61, %v122
    %vm129 = vcmp.gt.f32.partialorder %v66, %v122
    %vm130 = vcmp.gt.f32.partialorder %v71, %v122
    %vm131 = vcmp.gt.f32.partialorder %v76, %v122
    %vm132 = vcmp.gt.f32.partialorder %v81, %v122
    %vm133 = vcmp.gt.f32.partialorder %v86, %v122
    %vm134 = vcmp.gt.f32.partialorder %v91, %v122
    %vm135 = vcmp.gt.f32.partialorder %v96, %v122
    %vm136 = vcmp.gt.f32.partialorder %v101, %v122
    %vm137 = vcmp.gt.f32.partialorder %v106, %v122
    %vm138 = vcmp.gt.f32.partialorder %v111, %v122
    %vm139 = vcmp.gt.f32.partialorder %v116, %v122
    %v140 = vsel %vm124, 1, 0
    %v141 = vsel %vm125, 1, 0
    %v142 = vsel %vm126, 1, 0
    %v143 = vsel %vm127, 1, 0
    %v144 = vsel %vm128, 1, 0
    %v145 = vsel %vm129, 1, 0
    %v146 = vsel %vm130, 1, 0
    %v147 = vsel %vm131, 1, 0
    %v148 = vsel %vm132, 1, 0
    %v149 = vsel %vm133, 1, 0
    %v150 = vsel %vm134, 1, 0
    %v151 = vsel %vm135, 1, 0
    %v152 = vsel %vm136, 1, 0
    %v153 = vsel %vm137, 1, 0
    %v154 = vsel %vm138, 1, 0
    %v155 = vsel %vm139, 1, 0
    %v156 = vcvt.s32.f32 %v140
    %v157 = vcvt.s32.f32 %v141
    %v158 = vcvt.s32.f32 %v142
    %v159 = vcvt.s32.f32 %v143
    %v160 = vcvt.s32.f32 %v144
    %v161 = vcvt.s32.f32 %v145
    %v162 = vcvt.s32.f32 %v146
    %v163 = vcvt.s32.f32 %v147
    %v164 = vcvt.s32.f32 %v148
    %v165 = vcvt.s32.f32 %v149
    %v166 = vcvt.s32.f32 %v150
    %v167 = vcvt.s32.f32 %v151
    %v168 = vcvt.s32.f32 %v152
    %v169 = vcvt.s32.f32 %v153
    %v170 = vcvt.s32.f32 %v154
    %v171 = vcvt.s32.f32 %v155
    %v172 = vld [vmem:[#allocation2] sm:$0x1]
    %v173 = vadd.f32 %v156, %v157
    %v174 = vadd.f32 %v173, %v158
    %v175 = vadd.f32 %v174, %v159
    %v176 = vadd.f32 %v175, %v160
    %v177 = vadd.f32 %v176, %v161
    %v178 = vadd.f32 %v177, %v162
    %v179 = vadd.f32 %v178, %v163
    %v180 = vadd.f32 %v179, %v164
    %v181 = vadd.f32 %v180, %v165
    %v182 = vadd.f32 %v181, %v166
    %v183 = vadd.f32 %v182, %v167
    %v184 = vadd.f32 %v183, %v168
    %v185 = vadd.f32 %v184, %v169
    %v186 = vadd.f32 %v185, %v170
    %v187 = vadd.f32 %v186, %v171
    %v188 = vrot.slane %v187, 4
    %v189 = vadd.f32 %v187, %v188
    %v190 = vrot.slane %v189, 2
    %v191 = vadd.f32 %v189, %v190
    %v192 = vrot.slane %v191, 1
    %v193 = vadd.f32 %v191, %v192
    %v194 = vadd.f32 %v172, %v193
    %195 = vst [vmem:[#allocation2] sm:$0x1] %v194
    // Predicated region
    $region14: #{tpu_custom_call.1} parent=1 // pred_check
      %p196 = pneg %p16
    $region15: #{tpu_custom_call.1} parent=1 // pred_check_branch
      %198 = sbr.rel (%p196) target = $region17
    $region16: #{tpu_custom_call.1} parent=1 // pred_region
      %v199 = vld [vmem:[#allocation2] sm:$0x1]
      %v200 = vmul.f32 %v21, 0.6931472
      %v201 = vmul.f32 %v200, 1.442695
      %v202 = vpow.pop %v201
      %v203 = vsub.f32 %v202, 1.0
      %204 = vst [vmem:[#allocation4] sm:$0x1] %v203
      %vm205 = vcmp.lt.f32.partialorder %v199, 8.0
      %v206 = vadd.f32 %v199, 2.0
      %v207 = vlog2.pop %v206
      %v208 = vmul.f32 %v207, 0.6931472
      %v209 = vrcp.pop %v208
      %v210 = vmul.f32 0.6931472, %v209
      %v211 = vsel %vm205, %v210, 0.0
      %212 = vst [vmem:[#allocation6] sm:$0x1] %v211
    $region17: #{tpu_custom_call.1} parent=1 // pred_fallthru
      _
    // Predicated region
    $region18: #{tpu_custom_call.1} parent=1 // pred_check
      _
    $region19: #{tpu_custom_call.1} parent=1 // pred_check_branch
      %214 = sbr.rel (0) target = $region21
    $region20: #{tpu_custom_call.1} parent=1 // pred_region
      %s216 = ssub.s32 16, 16
      %217 = vsyncadd [#allocation3], %s216
      %s219 = sshll.u32 [#allocation2], 4
      %s220 = int_to_ptr.vmem [resolvable:$true] %s219
      %222 = dma.vmem_to_hbm [thread:$0]  %s220, 16, %s2, [#allocation3]
    $region21: #{tpu_custom_call.1} parent=1 // pred_fallthru
      _
    // Predicated region
    $region22: #{tpu_custom_call.1} parent=1 // pred_check
      _
    $region23: #{tpu_custom_call.1} parent=1 // pred_check_branch
      %224 = sbr.rel (0) target = $region25
    $region24: #{tpu_custom_call.1} parent=1 // pred_region
      %s226 = ssub.s32 16, 16
      %227 = vsyncadd [#allocation5], %s226
      %s229 = sshll.u32 [#allocation4], 4
      %s230 = int_to_ptr.vmem [resolvable:$true] %s229
      %232 = dma.vmem_to_hbm [thread:$0]  %s230, 16, %s3, [#allocation5]
    $region25: #{tpu_custom_call.1} parent=1 // pred_fallthru
      _
    // Predicated region
    $region26: #{tpu_custom_call.1} parent=1 // pred_check
      _
    $region27: #{tpu_custom_call.1} parent=1 // pred_check_branch
      %234 = sbr.rel (0) target = $region29
    $region28: #{tpu_custom_call.1} parent=1 // pred_region
      %s236 = ssub.s32 16, 16
      %237 = vsyncadd [#allocation5], %s236
      %s239 = sshll.u32 [#allocation6], 4
      %s240 = int_to_ptr.vmem [resolvable:$true] %s239
      %242 = dma.vmem_to_hbm [thread:$0]  %s240, 16, %s4, [#allocation5]
    $region29: #{tpu_custom_call.1} parent=1 // pred_fallthru
      _
    // Predicated region
    $region30: #{tpu_custom_call.1} parent=1 // pred_check
      _
    $region31: #{tpu_custom_call.1} parent=1 // pred_check_branch
      %244 = sbr.rel (0) target = $region33
    $region32: #{tpu_custom_call.1} parent=1 // pred_region
      %245 = dma.done [#allocation3], 16
    $region33: #{tpu_custom_call.1} parent=1 // pred_fallthru
      _
    // Predicated region
    $region34: #{tpu_custom_call.1} parent=1 // pred_check
      _
    $region35: #{tpu_custom_call.1} parent=1 // pred_check_branch
      %247 = sbr.rel (0) target = $region37
    $region36: #{tpu_custom_call.1} parent=1 // pred_region
      %248 = dma.done [#allocation5], 16
    $region37: #{tpu_custom_call.1} parent=1 // pred_fallthru
      _
    // Predicated region
    $region38: #{tpu_custom_call.1} parent=1 // pred_check
      _
    $region39: #{tpu_custom_call.1} parent=1 // pred_check_branch
      %250 = sbr.rel (0) target = $region41
    $region40: #{tpu_custom_call.1} parent=1 // pred_region
      %251 = dma.done [#allocation5], 16
    $region41: #{tpu_custom_call.1} parent=1 // pred_fallthru
      _
    %252 = vsyncpa [#allocation3], 1
    %253 = vsyncpa [#allocation5], 1

</llo_original>
